<compile_context>
chip_gen: v7x
topology: tpu7x:2x2x1
jax: 0.10.0
libtpu: 0.0.40
codegen_flags: <defaults>
</compile_context>

<pallas_src>
import functools
import math

import jax
import jax.numpy as jnp
from jax import lax
from jax.experimental import pallas as pl
from jax.experimental.pallas import tpu as pltpu

_SUBLANE = 8
_LANE = 128


def _round_up(a, b):
    return (a + b - 1) // b * b


def _xlogx(v):
    return float(v) * math.log(v) if v > 0.0 else 0.0


def _device_budget():
    """Return (block_bytes, tile_n_cap).

    Budget: 2 x block_bytes (double-buffered x) + 2 arrays x 2 buffers x
    tile_n*512 B (lane-padded (tile_n,1) target/output blocks) must stay under the
    scoped-VMEM default: 16 MiB on v5e, 32 MiB on v6e/v7x."""
    try:
        kind = jax.devices()[0].device_kind.lower()
    except Exception:
        kind = ""
    if ("v6" in kind) or ("v7" in kind) or ("7x" in kind):
        return 8 << 20, 2048     # ~16 MiB + ~4 MiB  -> under 32 MiB default
    return 4 << 20, 1024         # ~8 MiB + ~2 MiB   -> under 16 MiB default (v5e-safe)


def _label_smoothing_kernel(x_ref, tgt_ref, out_ref, *,
                            tile_v, v_total, padding_idx, confidence,
                            smooth_val, row_const, mask_last_v):
    """One grid step: a (tile_n, tile_v) slab of log-probs + (tile_n, 1) targets.

    Writes per-row partial loss contributions of this vocab slab into the (tile_n, 1)
    output block. The output block index does not depend on the vocab grid axis j, so
    it stays VMEM-resident and accumulates across j. Ragged row tails are safe because
    rows >= N are never written back to HBM; ragged vocab tails are masked in-kernel."""
    j = pl.program_id(1)

    # Native-dtype DMA; cast to f32 immediately after load (v5e VPU has no bf16 VALU).
    x = x_ref[...].astype(jnp.float32)               # (tile_n, tile_v)
    tgt = tgt_ref[...]                               # (tile_n, 1) int32

    # Block-local column ids (one (1, tile_v) row, broadcast against per-row targets).
    col = lax.broadcasted_iota(jnp.int32, (1, tile_v), 1)
    tgt_local = tgt - j * tile_v                     # (tile_n, 1)

    # x[i, target_i] restricted to this vocab slab (0 if target not in slab).
    # jnp.where is a true select: garbage/NaN in OOB tails never propagates.
    x_tgt = jnp.sum(jnp.where(col == tgt_local, x, 0.0), axis=1, keepdims=True)

    if mask_last_v:
        # Vocab blocking with V % tile_v != 0: zero out-of-range columns before the
        # row sum (only compiled in when the ragged-V path is actually used).
        x = jnp.where(col + j * tile_v < v_total, x, 0.0)

    # Row sum of this vocab slab.
    row_sum = jnp.sum(x, axis=1, keepdims=True)

    # x[i, padding_idx]: static column, lives in exactly one vocab slab.
    pad_blk = padding_idx // tile_v
    pad_off = padding_idx % tile_v
    x_pad = jnp.where(j == pad_blk, x[:, pad_off:pad_off + 1], 0.0)

    # Closed-form KLDiv('sum') contribution of this slab, per row:
    #   -confidence*x_tgt - smooth*(row_sum - x_tgt - x_pad)
    per_row = (smooth_val - confidence) * x_tgt - smooth_val * (row_sum - x_pad)
    valid = tgt != padding_idx                       # zero padded-target rows

    @pl.when(j == 0)
    def _():
        # Constant C = conf*log(conf) + (V-2)*smooth*log(smooth), once per valid row.
        out_ref[...] = jnp.where(valid, per_row + row_const, 0.0)

    @pl.when(j != 0)
    def _():
        out_ref[...] = out_ref[...] + jnp.where(valid, per_row, 0.0)


def label_smoothing_loss(x, target, *, padding_idx, smoothing=0.1,
                         tile_n=None, tile_v=None, block_bytes=None):
    """x: [N, V] float (f32 or bf16) log-probs, target: [N] int ids. Scalar f32 loss."""
    N, V = x.shape
    target = target.astype(jnp.int32)
    elem_bytes = jnp.dtype(x.dtype).itemsize
    # Sublane packing: 8 rows for 4-byte dtypes, 16 for 2-byte (bf16), 32 for 1-byte.
    row_align = max(_SUBLANE, 32 // max(1, elem_bytes))

    default_block, tile_n_cap = _device_budget()
    if block_bytes is None:
        block_bytes = default_block

    confidence = 1.0 - smoothing
    smooth_val = smoothing / (V - 2)
    # Per-valid-row "entropy" constant of the smoothed target distribution.
    row_const = _xlogx(confidence) + (V - 2) * _xlogx(smooth_val)

    # ---- vocab tiling: single full-V slab unless even a minimal-row block overflows.
    if tile_v is None:
        tile_v = V if V * elem_bytes * row_align <= block_bytes else 8192
    if tile_v >= V:
        tile_v = V
    else:
        tile_v = max(_LANE, (int(tile_v) // _LANE) * _LANE)
    num_v_tiles = pl.cdiv(V, tile_v)
    mask_last_v = (tile_v < V) and (V % tile_v != 0)

    # ---- row tiling: big HBM-roofline-sized slabs, VMEM-budgeted, megacore-aware.
    auto_tile_n = tile_n is None
    if auto_tile_n:
        tile_n = min(tile_n_cap, max(row_align, block_bytes // (tile_v * elem_bytes)))
    tile_n = max(row_align, (int(tile_n) // row_align) * row_align)
    tile_n = min(tile_n, _round_up(N, row_align))
    if auto_tile_n and N > row_align and pl.cdiv(N, tile_n) < 2:
        # Guarantee >=2 row tiles so the 'parallel' axis shards across both TCs (v7x).
        tile_n = max(row_align, _round_up(pl.cdiv(N, 2), row_align))
    num_row_tiles = pl.cdiv(N, tile_n)

    target2d = target.reshape(N, 1)
    grid = (num_row_tiles, num_v_tiles)

    kernel = functools.partial(
        _label_smoothing_kernel,
        tile_v=tile_v, v_total=V, padding_idx=int(padding_idx),
        confidence=float(confidence), smooth_val=float(smooth_val),
        row_const=float(row_const), mask_last_v=bool(mask_last_v))

    per_row = pl.pallas_call(
        kernel,
        out_shape=jax.ShapeDtypeStruct((N, 1), jnp.float32),
        grid_spec=pltpu.PrefetchScalarGridSpec(
            num_scalar_prefetch=0,
            grid=grid,
            in_specs=[
                pl.BlockSpec((tile_n, tile_v), lambda i, j: (i, j)),
                pl.BlockSpec((tile_n, 1), lambda i, j: (i, 0)),
            ],
            out_specs=pl.BlockSpec((tile_n, 1), lambda i, j: (i, 0)),
        ),
        compiler_params=pltpu.CompilerParams(
            # Rows are independent (per-row-tile outputs) -> megacore-shardable on
            # v7x; vocab axis accumulates into the resident output block.
            dimension_semantics=("parallel", "arbitrary")),
        cost_estimate=pl.CostEstimate(
            flops=4 * N * V,
            transcendentals=0,
            bytes_accessed=N * V * elem_bytes + N * 4 + N * 4),
    )(x, target2d)

    # Final reduction of per-row partials as an accurate XLA tree-reduce.
    return jnp.sum(per_row)


def _reference_loss(x, target, *, padding_idx, smoothing):
    """Pure-JAX reference mirroring the PyTorch module."""
    x = x.astype(jnp.float32)
    N, V = x.shape
    confidence = 1.0 - smoothing
    true_dist = jnp.full((N, V), smoothing / (V - 2), jnp.float32)
    true_dist = true_dist.at[jnp.arange(N), target].set(confidence)
    true_dist = true_dist.at[:, padding_idx].set(0.0)
    true_dist = jnp.where((target == padding_idx)[:, None], 0.0, true_dist)
    safe = jnp.where(true_dist > 0.0, true_dist, 1.0)
    term = jnp.where(true_dist > 0.0, true_dist * (jnp.log(safe) - x), 0.0)
    return jnp.sum(term)


if __name__ == "__main__":
    def _make_case(key, n, v, pad, n_pad_rows, dtype=jnp.float32):
        k1, k2, k3 = jax.random.split(key, 3)
        logits = jax.random.normal(k1, (n, v), jnp.float32)
        xs = jax.nn.log_softmax(logits, axis=-1).astype(dtype)  # KLDivLoss input = log-probs
        tgt = jax.random.randint(k2, (n,), 0, v, jnp.int32)
        if n_pad_rows:
            idx = jax.random.choice(k3, n, (n_pad_rows,), replace=False)
            tgt = tgt.at[idx].set(pad)
        return xs, tgt

    key = jax.random.PRNGKey(0)
    k1, k2, k3, k4 = jax.random.split(key, 4)
    cases = []

    # Case 1: module-sized example (batch=2, seq=8 -> N=16 rows, vocab=128, pad=0).
    x1, t1 = _make_case(k1, 2 * 8, 128, 0, 2)
    cases.append((label_smoothing_loss(x1, t1, padding_idx=0, smoothing=0.1),
                  _reference_loss(x1, t1, padding_idx=0, smoothing=0.1), 1e-5, 1e-4))

    # Case 2: ragged row count (exercises ragged last row block, no padding of x).
    x2, t2 = _make_case(k2, 137, 384, 5, 7)
    cases.append((label_smoothing_loss(x2, t2, padding_idx=5, smoothing=0.2),
                  _reference_loss(x2, t2, padding_idx=5, smoothing=0.2), 1e-5, 1e-4))

    # Case 3: forced vocab-axis blocking with ragged V (in-kernel column mask path).
    x3, t3 = _make_case(k3, 96, 300, 200, 5)
    cases.append((label_smoothing_loss(x3, t3, padding_idx=200, smoothing=0.1,
                                       tile_v=128, tile_n=32),
                  _reference_loss(x3, t3, padding_idx=200, smoothing=0.1), 1e-5, 1e-4))

    # Case 4: bf16 log-probs (native bf16 DMA, in-kernel f32 cast, 16-row alignment).
    x4, t4 = _make_case(k4, 64, 512, 3, 6, dtype=jnp.bfloat16)
    cases.append((label_smoothing_loss(x4, t4, padding_idx=3, smoothing=0.1),
                  _reference_loss(x4, t4, padding_idx=3, smoothing=0.1), 1e-4, 1e-3))

    for got, want, rtol, atol in cases:
        got = jax.block_until_ready(got)
        want = jax.block_until_ready(want)
        assert jnp.allclose(got, want, rtol=rtol, atol=atol), (got, want)

    print("KERNEL_OK")
</pallas_src>

<mosaic_0001>
module attributes {stable_mosaic.version = 11 : i64} {
  func.func @_label_smoothing_kernel(%arg0: i32, %arg1: i32, %arg2: memref<8x128xf32, #tpu.memory_space<vmem>>, %arg3: memref<8x1xi32, #tpu.memory_space<vmem>>, %arg4: memref<8x1xf32, #tpu.memory_space<vmem>>) attributes {dimension_semantics = [#tpu.dimension_semantics<parallel>, #tpu.dimension_semantics<arbitrary>], iteration_bounds = array<i64: 2, 1>, scalar_prefetch = 0 : i64, scratch_operands = 0 : i64, tpu.core_type = #tpu.core_type<tc>, window_params = [{transform_indices = @transform_0, window_bounds = array<i64: 8, 128>}, {transform_indices = @transform_1, window_bounds = array<i64: 8, 1>}, {transform_indices = @transform_2, window_bounds = array<i64: 8, 1>}]} {
    %c0 = arith.constant 0 : index
    %c0_0 = arith.constant 0 : index
    %0 = vector.load %arg2[%c0, %c0_0] : memref<8x128xf32, #tpu.memory_space<vmem>>, vector<8x128xf32>
    %c0_1 = arith.constant 0 : index
    %c0_2 = arith.constant 0 : index
    %1 = vector.load %arg3[%c0_1, %c0_2] : memref<8x1xi32, #tpu.memory_space<vmem>>, vector<8x1xi32>
    %2 = tpu.iota {dimensions = array<i32: 1>} : vector<1x128xi32>
    %c128_i32 = arith.constant 128 : i32
    %3 = arith.muli %arg1, %c128_i32 : i32
    %4 = vector.broadcast %3 : i32 to vector<8x1xi32>
    %5 = arith.subi %1, %4 : vector<8x1xi32>
    %6 = vector.broadcast %2 : vector<1x128xi32> to vector<8x128xi32>
    %7 = vector.broadcast %5 : vector<8x1xi32> to vector<8x128xi32>
    %8 = arith.cmpi eq, %6, %7 : vector<8x128xi32>
    %cst = arith.constant 0.000000e+00 : f32
    %9 = vector.broadcast %cst : f32 to vector<8x128xf32>
    %10 = arith.select %8, %0, %9 : vector<8x128xi1>, vector<8x128xf32>
    %cst_3 = arith.constant dense<0.000000e+00> : vector<8xf32>
    %11 = vector.multi_reduction <add>, %10, %cst_3 [1] : vector<8x128xf32> to vector<8xf32>
    %12 = vector.shape_cast %11 : vector<8xf32> to vector<8x1xf32>
    %cst_4 = arith.constant dense<0.000000e+00> : vector<8xf32>
    %13 = vector.multi_reduction <add>, %0, %cst_4 [1] : vector<8x128xf32> to vector<8xf32>
    %14 = vector.shape_cast %13 : vector<8xf32> to vector<8x1xf32>
    %c0_i32 = arith.constant 0 : i32
    %15 = arith.cmpi eq, %arg1, %c0_i32 : i32
    %16 = vector.extract_strided_slice %0 {offsets = [0, 0], sizes = [8, 1], strides = [1, 1]} : vector<8x128xf32> to vector<8x1xf32>
    %cst_5 = arith.constant 0.000000e+00 : f32
    %17 = vector.broadcast %cst_5 : f32 to vector<8x1xf32>
    %18 = arith.select %15, %16, %17 : vector<8x1xf32>
    %cst_6 = arith.constant -0.89920634 : f32
    %19 = vector.broadcast %cst_6 : f32 to vector<8x1xf32>
    %20 = arith.mulf %19, %12 : vector<8x1xf32>
    %21 = arith.subf %14, %18 : vector<8x1xf32>
    %cst_7 = arith.constant 7.93650805E-4 : f32
    %22 = vector.broadcast %cst_7 : f32 to vector<8x1xf32>
    %23 = arith.mulf %22, %21 : vector<8x1xf32>
    %24 = arith.subf %20, %23 : vector<8x1xf32>
    %c0_i32_8 = arith.constant 0 : i32
    %25 = vector.broadcast %c0_i32_8 : i32 to vector<8x1xi32>
    %26 = arith.cmpi ne, %1, %25 : vector<8x1xi32>
    %c0_i32_9 = arith.constant 0 : i32
    %27 = arith.cmpi eq, %arg1, %c0_i32_9 : i32
    %28 = arith.extui %27 : i1 to i32
    %c0_i32_10 = arith.constant 0 : i32
    %29 = arith.cmpi ne, %28, %c0_i32_10 : i32
    scf.if %29 {
      %cst_13 = arith.constant -0.808711171 : f32
      %33 = vector.broadcast %cst_13 : f32 to vector<8x1xf32>
      %34 = arith.addf %24, %33 : vector<8x1xf32>
      %cst_14 = arith.constant 0.000000e+00 : f32
      %35 = vector.broadcast %cst_14 : f32 to vector<8x1xf32>
      %36 = arith.select %26, %34, %35 : vector<8x1xi1>, vector<8x1xf32>
      %c0_15 = arith.constant 0 : index
      %c0_16 = arith.constant 0 : index
      %37 = vector.load %arg4[%c0_15, %c0_16] : memref<8x1xf32, #tpu.memory_space<vmem>>, vector<8x1xf32>
      tpu.vector_store %arg4[%c0_15, %c0_16], %36 {strides = array<i32>} : memref<8x1xf32, #tpu.memory_space<vmem>>, vector<8x1xf32>,
    } else {
    }
    %c0_i32_11 = arith.constant 0 : i32
    %30 = arith.cmpi ne, %arg1, %c0_i32_11 : i32
    %31 = arith.extui %30 : i1 to i32
    %c0_i32_12 = arith.constant 0 : i32
    %32 = arith.cmpi ne, %31, %c0_i32_12 : i32
    scf.if %32 {
      %c0_13 = arith.constant 0 : index
      %c0_14 = arith.constant 0 : index
      %33 = vector.load %arg4[%c0_13, %c0_14] : memref<8x1xf32, #tpu.memory_space<vmem>>, vector<8x1xf32>
      %cst_15 = arith.constant 0.000000e+00 : f32
      %34 = vector.broadcast %cst_15 : f32 to vector<8x1xf32>
      %35 = arith.select %26, %24, %34 : vector<8x1xi1>, vector<8x1xf32>
      %36 = arith.addf %33, %35 : vector<8x1xf32>
      %c0_16 = arith.constant 0 : index
      %c0_17 = arith.constant 0 : index
      %37 = vector.load %arg4[%c0_16, %c0_17] : memref<8x1xf32, #tpu.memory_space<vmem>>, vector<8x1xf32>
      tpu.vector_store %arg4[%c0_16, %c0_17], %36 {strides = array<i32>} : memref<8x1xf32, #tpu.memory_space<vmem>>, vector<8x1xf32>,
    } else {
    }
    return
  }
  func.func @transform_0(%arg0: i32, %arg1: i32) -> (i32, i32) {
    %c0_i32 = arith.constant 0 : i32
    return %arg0, %arg1 : i32, i32
  }
  func.func @transform_1(%arg0: i32, %arg1: i32) -> (i32, i32) {
    %c0_i32 = arith.constant 0 : i32
    %c0_i32_0 = arith.constant 0 : i32
    return %arg0, %c0_i32 : i32, i32
  }
  func.func @transform_2(%arg0: i32, %arg1: i32) -> (i32, i32) {
    %c0_i32 = arith.constant 0 : i32
    %c0_i32_0 = arith.constant 0 : i32
    return %arg0, %c0_i32 : i32, i32
  }
}

</mosaic_0001>

<llo_original>
// kernel: tpu_custom_call.1
$region0: #{tpu_custom_call.1}
  #allocation0 [shape = 'u32[]', space=smem, size = 0x4, offset = 0x4, fixed_abs, tag = 'smem constant byte address 0x4 - core index']
  #allocation1 [shape = 'u32[144,128]{1,0:T(1,128)}', space=vmem, size = 0x12000, scoped, tag = 'internal scratch']
  %s0 = inlined_call_operand.vmem [shape: f32[16,128], index: 0, kind: input, shape index: {}]
  %s1 = inlined_call_operand.vmem [shape: s32[16,1], index: 1, kind: input, shape index: {}]
  %s2 = inlined_call_operand.vmem [shape: f32[16,1], index: 2, kind: output, shape index: {}]
  %s3 = sld [smem:[#allocation0]]
  $region49: #{tpu_custom_call.1} parent=0
    _
  %s5 = ssub.s32 1, %s3
  %s6 = scalar_select 0, %s5, %s3
  loop: start=0, step=1, limit=4
  $region2: #{tpu_custom_call.1} parent=0 // loop_pre_header
    _
  $region3: #{tpu_custom_call.1} parent=0 // loop_header
    %s8 = sphi 0, %s12
    %p9 = scmp.ge.s32.totalorder %s8, 4
    %s15 = sphi 0, %s27
    %s16 = sphi 0, %s23
    %s17 = sphi 0, %s15
    %s18 = sphi 0, %s16
    %s19 = sphi 0, %s17
    %s20 = sphi 0, %s18
    %s32 = sphi 0, %s34
    %s35 = sphi 0, %s32
    %s36 = sphi 0, %s35
    %s52 = sphi 0, %s36
    %s58 = sphi 0, %s60
    %s61 = sphi 0, %s58
    %s62 = sphi 0, %s61
    %s78 = sphi 0, %s62
    %s84 = sphi 0, %s86
    %s87 = sphi 0, %s84
    %s88 = sphi 0, %s87
    %s104 = sphi 0, %s88
  $region4: #{tpu_custom_call.1} parent=0 // loop_header_branch
    %11 = sbr.rel (%p9) target = $region8
  $region5: #{tpu_custom_call.1} parent=0 // loop_body
    %s13 = ssub.s32 %s8, 1
    %s14 = ssub.s32 %s8, 2
    %s21 = sadd.s32 1, %s16
    %p22 = scmp.ge.s32.totalorder %s21, 1
    %s23 = scalar_select %p22, 0, %s21
    %s24 = sadd.s32 1, %s15
    %s25 = scalar_select %p22, %s24, %s15
    %p26 = scmp.ge.s32.totalorder %s25, 2
    %s27 = scalar_select %p26, 0, %s25
    %s28 = ssub.s32 %s15, %s27
    %s29 = ssub.s32 %s16, %s23
    %s30 = sor.u32 %s28, %s29
    %p31 = scmp.eq.s32.totalorder %s30, 0
    %s33 = sadd.s32 %s32, 1
    %s34 = scalar_select %p31, %s32, %s33
    %p37 = pneg %p31
    %p38 = scmp.eq.s32.totalorder %s8, 1
    %p39 = por %p37, %p38
    %p40 = scmp.ne.s32.totalorder %s32, %s35
    %p41 = scmp.eq.s32.totalorder %s8, 0
    %p42 = por %p40, %p41
    %p43 = scmp.ne.s32.totalorder %s32, %s35
    %p44 = scmp.eq.s32.totalorder %s13, 1
    %p45 = por %p43, %p44
    %p46 = scmp.ne.s32.totalorder %s35, %s36
    %p47 = scmp.eq.s32.totalorder %s13, 0
    %p48 = por %p46, %p47
    %p49 = scmp.ne.s32.totalorder %s35, %s36
    %p50 = scmp.eq.s32.totalorder %s14, 1
    %p51 = por %p49, %p50
    %p53 = scmp.ne.s32.totalorder %s36, %s52
    %p54 = scmp.eq.s32.totalorder %s14, 0
    %p55 = por %p53, %p54
    %s56 = ssub.s32 %s15, %s27
    %p57 = scmp.eq.s32.totalorder %s56, 0
    %s59 = sadd.s32 %s58, 1
    %s60 = scalar_select %p57, %s58, %s59
    %p63 = pneg %p57
    %p64 = scmp.eq.s32.totalorder %s8, 1
    %p65 = por %p63, %p64
    %p66 = scmp.ne.s32.totalorder %s58, %s61
    %p67 = scmp.eq.s32.totalorder %s8, 0
    %p68 = por %p66, %p67
    %p69 = scmp.ne.s32.totalorder %s58, %s61
    %p70 = scmp.eq.s32.totalorder %s13, 1
    %p71 = por %p69, %p70
    %p72 = scmp.ne.s32.totalorder %s61, %s62
    %p73 = scmp.eq.s32.totalorder %s13, 0
    %p74 = por %p72, %p73
    %p75 = scmp.ne.s32.totalorder %s61, %s62
    %p76 = scmp.eq.s32.totalorder %s14, 1
    %p77 = por %p75, %p76
    %p79 = scmp.ne.s32.totalorder %s62, %s78
    %p80 = scmp.eq.s32.totalorder %s14, 0
    %p81 = por %p79, %p80
    %s82 = ssub.s32 %s15, %s27
    %p83 = scmp.eq.s32.totalorder %s82, 0
    %s85 = sadd.s32 %s84, 1
    %s86 = scalar_select %p83, %s84, %s85
    %p89 = pneg %p83
    %p90 = scmp.eq.s32.totalorder %s8, 1
    %p91 = por %p89, %p90
    %p92 = scmp.ne.s32.totalorder %s84, %s87
    %p93 = scmp.eq.s32.totalorder %s8, 0
    %p94 = por %p92, %p93
    %p95 = scmp.ne.s32.totalorder %s84, %s87
    %p96 = scmp.eq.s32.totalorder %s13, 1
    %p97 = por %p95, %p96
    %p98 = scmp.ne.s32.totalorder %s87, %s88
    %p99 = scmp.eq.s32.totalorder %s13, 0
    %p100 = por %p98, %p99
    %p101 = scmp.ne.s32.totalorder %s87, %s88
    %p102 = scmp.eq.s32.totalorder %s14, 1
    %p103 = por %p101, %p102
    %p105 = scmp.ne.s32.totalorder %s88, %s104
    %p106 = scmp.eq.s32.totalorder %s14, 0
    %p107 = por %p105, %p106
    %p108 = scmp.le.s32.totalorder 1, %s8
    %p109 = scmp.lt.s32.totalorder %s8, 3
    %p110 = pnand %p108, %p109
    %p111 = pneg %p110
    // Predicated region
    $region9: #{tpu_custom_call.1} parent=5 // pred_check
      _
    $region10: #{tpu_custom_call.1} parent=5 // pred_check_branch
      %113 = sbr.rel (%p110) target = $region12
    $region11: #{tpu_custom_call.1} parent=5 // pred_region
      %s114 = ssub.s32 %s8, 1
    $region12: #{tpu_custom_call.1} parent=5 // pred_fallthru
      _
    %p115 = scmp.lt.s32.totalorder %s8, 2
    // Predicated region
    $region13: #{tpu_custom_call.1} parent=5 // pred_check
      %p116 = pneg %p115
    $region14: #{tpu_custom_call.1} parent=5 // pred_check_branch
      %118 = sbr.rel (%p116) target = $region16
    $region15: #{tpu_custom_call.1} parent=5 // pred_region
      // Predicated region
      $region17: #{tpu_custom_call.1} parent=15 // pred_check
        %p119 = pneg %p42
      $region18: #{tpu_custom_call.1} parent=15 // pred_check_branch
        %121 = sbr.rel (%p119) target = $region20
      $region19: #{tpu_custom_call.1} parent=15 // pred_region
        %p122 = scmp.lt.s32.totalorder %s15, 1
        %s123 = scalar_select %p122, %s15, 1
        %p124 = scmp.lt.s32.totalorder %s16, 0
        %s125 = scalar_select %p124, %s16, 0
        %s126 = sadd.s32 %s125, %s123
        %s127 = smul.addr %s126, 8
        %s128 = scalar_lea.vmem %s0, %s127
      $region20: #{tpu_custom_call.1} parent=15 // pred_fallthru
        _
      // Predicated region
      $region21: #{tpu_custom_call.1} parent=15 // pred_check
        %p129 = pneg %p68
      $region22: #{tpu_custom_call.1} parent=15 // pred_check_branch
        %131 = sbr.rel (%p129) target = $region24
      $region23: #{tpu_custom_call.1} parent=15 // pred_region
        %p132 = scmp.lt.s32.totalorder %s15, 1
        %s133 = scalar_select %p132, %s15, 1
        %s134 = smul.addr %s133, 8
        %s135 = scalar_lea.vmem %s1, %s134
      $region24: #{tpu_custom_call.1} parent=15 // pred_fallthru
        _
    $region16: #{tpu_custom_call.1} parent=5 // pred_fallthru
      _
    %p136 = scmp.le.s32.totalorder 1, %s8
    %p137 = scmp.lt.s32.totalorder %s8, 3
    %p138 = pnand %p136, %p137
    %p139 = pneg %p138
    // Predicated region
    $region25: #{tpu_custom_call.1} parent=5 // pred_check
      _
    $region26: #{tpu_custom_call.1} parent=5 // pred_check_branch
      %141 = sbr.rel (%p138) target = $region28
    $region27: #{tpu_custom_call.1} parent=5 // pred_region
      %s142 = ssub.s32 %s8, 1
      %p143 = scmp.lt.s32.totalorder %s17, 1
      %s144 = scalar_select %p143, %s17, 1
      %p145 = scmp.lt.s32.totalorder %s18, 0
      %s146 = scalar_select %p145, %s18, 0
      %s147 = sadd.s32 %s146, %s144
      %s148 = smul.addr %s147, 8
      %s149 = scalar_lea.vmem %s0, %s148
      %p150 = pneg %p48
      %p151 = pneg %p45
      %p152 = scmp.lt.s32.totalorder %s17, 1
      %s153 = scalar_select %p152, %s17, 1
      %s154 = smul.addr %s153, 8
      %s155 = scalar_lea.vmem %s1, %s154
      %p156 = pneg %p74
      %p157 = pneg %p71
      %p158 = pneg %p100
      %p159 = pneg %p97
      %p160 = scmp.lt.s32.totalorder %s17, 1
      %s161 = scalar_select %p160, %s17, 1
      %s162 = smul.addr %s161, 8
      %s163 = scalar_lea.vmem %s2, %s162
      %p164 = scmp.lt.s32.totalorder %s17, 1
      %s165 = scalar_select %p164, %s17, 1
      %p166 = scmp.lt.s32.totalorder %s18, 0
      %s167 = scalar_select %p166, %s18, 0
      %s168 = sadd.s32 %s167, %s165
      %s169 = smul.addr %s168, 8
      %s170 = scalar_lea.vmem %s0, %s169
      %p171 = scmp.lt.s32.totalorder %s17, 1
      %s172 = scalar_select %p171, %s17, 1
      %s173 = smul.addr %s172, 8
      %s174 = scalar_lea.vmem %s1, %s173
      %p175 = scmp.lt.s32.totalorder %s17, 1
      %s176 = scalar_select %p175, %s17, 1
      %s177 = smul.addr %s176, 8
      %s178 = scalar_lea.vmem %s2, %s177
      %v179 = vld [vmem:[%s170] sm:$0xff]
      %v180 = vld [vmem:[%s174] sm:$0xff]
      %v181 = vlaneseq
      %v182 = vand.u32 %v181, 127
      %s183 = smul.u32 %s18, 128
      %v184 = vstv %s183
      %v185 = vsub.s32 %v180, %v184
      %186 = vset.pattern.permute.xlu0 0
      %187 = vperm.xlu0 %186, %v185
      %v188 = vpop.permute.xlu0 %187
      %vm189 = vcmp.eq.s32.totalorder %v182, %v188
      %v190 = vsel %vm189, %v179, 0.0
      %191 = vadd.xlane.f32.xlu0 %v190
      %v192 = vpop.xlane.xlu0 %191
      %193 = vadd.xlane.f32.xlu0 %v179
      %v194 = vpop.xlane.xlu0 %193
      %p195 = scmp.eq.s32.totalorder %s18, 0
      %s196 = scalar_select %p195, 1, 0
      %v197 = vstv %s196
      %vm198 = vcmp.eq.s32.totalorder %v197, 1
      %v199 = vsel %vm198, %v179, 0.0
      %v200 = vmul.f32 %v192, -0.89920634
      %v201 = vsub.f32 %v194, %v199
      %v202 = vmul.f32 %v201, 0.0007936508
      %v203 = vsub.f32 %v200, %v202
      %vm204 = vcmp.ne.s32.totalorder %v180, 0
      // Predicated region
      $region29: #{tpu_custom_call.1} parent=27 // pred_check
        %p205 = pneg %p195
      $region30: #{tpu_custom_call.1} parent=27 // pred_check_branch
        %207 = sbr.rel (%p205) target = $region32
      $region31: #{tpu_custom_call.1} parent=27 // pred_region
        %v208 = vadd.f32 %v203, -0.8087112
        %v209 = vsel %vm204, %v208, 0.0
        %vm210 = vcmask 7168
        %211 = vst.msk [vmem:[%s178] sm:$0xff] %vm210, %v209
      $region32: #{tpu_custom_call.1} parent=27 // pred_fallthru
        _
      %p212 = scmp.ne.s32.totalorder %s18, 0
      // Predicated region
      $region33: #{tpu_custom_call.1} parent=27 // pred_check
        %p213 = pneg %p212
      $region34: #{tpu_custom_call.1} parent=27 // pred_check_branch
        %215 = sbr.rel (%p213) target = $region36
      $region35: #{tpu_custom_call.1} parent=27 // pred_region
        %v216 = vld [vmem:[%s178] sm:$0xff]
        %v217 = vsel %vm204, %v203, 0.0
        %v218 = vadd.f32 %v216, %v217
        %vm219 = vcmask 7168
        %220 = vst.msk [vmem:[%s178] sm:$0xff] %vm219, %v218
      $region36: #{tpu_custom_call.1} parent=27 // pred_fallthru
        _
      %p221 = scmp.lt.s32.totalorder %s17, 1
      %s222 = scalar_select %p221, %s17, 1
      %s223 = smul.addr %s222, 8
      %s224 = scalar_lea.vmem %s2, %s223
      // Predicated region
      $region37: #{tpu_custom_call.1} parent=27 // pred_check
        %p225 = pneg %p97
      $region38: #{tpu_custom_call.1} parent=27 // pred_check_branch
        %227 = sbr.rel (%p225) target = $region40
      $region39: #{tpu_custom_call.1} parent=27 // pred_region
        _
      $region40: #{tpu_custom_call.1} parent=27 // pred_fallthru
        _
    $region28: #{tpu_custom_call.1} parent=5 // pred_fallthru
      _
    %p228 = scmp.le.s32.totalorder 2, %s8
    // Predicated region
    $region41: #{tpu_custom_call.1} parent=5 // pred_check
      %p229 = pneg %p228
    $region42: #{tpu_custom_call.1} parent=5 // pred_check_branch
      %231 = sbr.rel (%p229) target = $region44
    $region43: #{tpu_custom_call.1} parent=5 // pred_region
      %s232 = ssub.s32 %s8, 2
      // Predicated region
      $region45: #{tpu_custom_call.1} parent=43 // pred_check
        %p233 = pneg %p103
      $region46: #{tpu_custom_call.1} parent=43 // pred_check_branch
        %235 = sbr.rel (%p233) target = $region48
      $region47: #{tpu_custom_call.1} parent=43 // pred_region
        %p236 = scmp.lt.s32.totalorder %s19, 1
        %s237 = scalar_select %p236, %s19, 1
        %s238 = smul.addr %s237, 8
        %s239 = scalar_lea.vmem %s2, %s238
      $region48: #{tpu_custom_call.1} parent=43 // pred_fallthru
        _
    $region44: #{tpu_custom_call.1} parent=5 // pred_fallthru
      _
  $region6: #{tpu_custom_call.1} parent=0 // loop_footer
    %s12 = sadd.s32 1, %s8
  $region7: #{tpu_custom_call.1} parent=0 // loop_footer_branch
    %7 = sbr.rel target = $region3
  $region8: #{tpu_custom_call.1} parent=0 // loop_exit
    _

</llo_original>
